<compile_context>
chip_gen: v7x
topology: tpu7x:2x2x1
jax: 0.10.0
libtpu: 0.0.40
codegen_flags: <defaults>
</compile_context>

<pallas_src>
import jax
import jax.numpy as jnp
from jax.experimental import pallas as pl
from jax.experimental.pallas import tpu as pltpu

LANE = 128


def feedforward_kernel(x_ref, w1_ref, b1_ref, w2_ref, b2_ref, o_ref):
    # Layer 1: Linear + Sigmoid.  bf16 operands on the MXU, f32 accumulate,
    # f32 elementwise (v5e VPU/EUP have no bf16).
    h = jnp.dot(x_ref[...], w1_ref[...], preferred_element_type=jnp.float32)
    h = jax.nn.sigmoid(h + b1_ref[...])                 # (tb, d1) + (1, d1)

    # Layer 2: Linear.  Cast activations to bf16 for the MXU.
    logits = jnp.dot(h.astype(w2_ref.dtype), w2_ref[...],
                     preferred_element_type=jnp.float32)
    logits = logits + b2_ref[...]                       # padded cols get -1e30 bias

    # Numerically-stable softmax over the lane-dense (padded) feature axis.
    # Padded columns contribute exp(-huge) == 0, so the normalization equals
    # softmax over the original k columns.
    m = jnp.max(logits, axis=-1, keepdims=True)
    e = jnp.exp(logits - m)
    denom = jnp.sum(e, axis=-1, keepdims=True)
    # Exact divide (not approx vrcp): rows must sum to 1.
    o_ref[...] = (e / denom).astype(o_ref.dtype)


def feedforward(x, w1, b1, w2, b2, *, tb=None,
                vmem_budget_bytes=32 * 1024 * 1024):
    """x: (B, d); w1: (d, d1); b1: (d1,); w2: (d1, k); b2: (k,) -> (B, k) f32."""
    B, d = x.shape
    d1 = w1.shape[1]
    k = w2.shape[1]

    # Pad k up to a lane-dense width so the output store is an unmasked vst.
    k_pad = ((k + LANE - 1) // LANE) * LANE

    # bf16 MXU operands; biases stay f32 (added post-accumulation in f32).
    x_bf = x.astype(jnp.bfloat16)
    w1_bf = w1.astype(jnp.bfloat16)
    w2_bf = jnp.zeros((d1, k_pad), jnp.bfloat16).at[:, :k].set(
        w2.astype(jnp.bfloat16))
    b1_2d = b1.reshape(1, d1).astype(jnp.float32)
    # Padded logit columns get a huge negative bias -> exp underflows to 0.
    b2_2d = jnp.full((1, k_pad), -1e30, jnp.float32).at[0, :k].set(
        b2.astype(jnp.float32))

    # ---- VMEM-budget-derived batch tile ------------------------------------
    # Resident (single-buffered) operands:
    resident = d * d1 * 2 + d1 * 4 + d1 * k_pad * 2 + k_pad * 4
    # Per-row cost: double-buffered bf16 x tile, double-buffered f32 out tile,
    # plus f32 intermediates (h, logits/e) with a little slack.
    per_row = 2 * d * 2 + 2 * k_pad * 4 + (d1 + 2 * k_pad) * 4
    if tb is None:
        budget = max(vmem_budget_bytes - resident, per_row * 8)
        tb = max(8, min(B, budget // max(per_row, 1)))
    tb = int(min(tb, B))
    if tb != B and tb % 8 != 0:
        # (8, 128) sublane rule: block rows must be a multiple of 8 or == B.
        tb = max(8, (tb // 8) * 8)
    grid = (pl.cdiv(B, tb),)
    # Note: if B % tb != 0 the last tile's padding rows hold unspecified data;
    # every op here is row-wise and the padded rows are dropped at writeback,
    # so this is safe.  Do NOT add cross-row reductions without masking.

    cost = pl.CostEstimate(
        flops=2 * B * d * d1 + 2 * B * d1 * k_pad,
        transcendentals=B * d1 + B * k_pad,              # sigmoid + softmax exp
        bytes_accessed=(B * d * 2 + d * d1 * 2 + d1 * 4
                        + d1 * k_pad * 2 + k_pad * 4 + B * k_pad * 4),
    )

    # Constant-index_map operands: single-buffer them (double-buffering a
    # never-changing block is pure VMEM waste).
    resident_mode = pl.Buffered(1)

    out_pad = pl.pallas_call(
        feedforward_kernel,
        out_shape=jax.ShapeDtypeStruct((B, k_pad), jnp.float32),
        grid_spec=pl.GridSpec(
            grid=grid,
            in_specs=[
                # x tiled along batch -> pipelined HBM->VMEM DMA.
                pl.BlockSpec((tb, d), lambda i: (i, 0)),
                # Weights / biases: resident in VMEM across grid steps.
                pl.BlockSpec((d, d1), lambda i: (0, 0),
                             pipeline_mode=resident_mode),
                pl.BlockSpec((1, d1), lambda i: (0, 0),
                             pipeline_mode=resident_mode),
                pl.BlockSpec((d1, k_pad), lambda i: (0, 0),
                             pipeline_mode=resident_mode),
                pl.BlockSpec((1, k_pad), lambda i: (0, 0),
                             pipeline_mode=resident_mode),
            ],
            out_specs=pl.BlockSpec((tb, k_pad), lambda i: (i, 0)),
        ),
        compiler_params=pltpu.CompilerParams(
            # Independent batch tiles -> megacore sharding on v7x.
            dimension_semantics=("parallel",),
            vmem_limit_bytes=64 * 1024 * 1024,
        ),
        cost_estimate=cost,
    )(x_bf, w1_bf, b1_2d, w2_bf, b2_2d)

    # Wrapper-side layout plumbing: drop the padded (all-zero) softmax columns.
    return out_pad[:, :k]


if __name__ == "__main__":
    # Small shapes consistent with the module.
    B, d, d1, k = 64, 32, 64, 16

    key = jax.random.PRNGKey(0)
    kx, kw1, kb1, kw2, kb2 = jax.random.split(key, 5)

    x = jax.random.normal(kx, (B, d), dtype=jnp.float32)
    # Deterministic parameter init (mimic PyTorch Linear uniform bounds).
    bound1 = 1.0 / jnp.sqrt(d)
    w1 = jax.random.uniform(kw1, (d, d1), jnp.float32, -bound1, bound1)
    b1 = jax.random.uniform(kb1, (d1,), jnp.float32, -bound1, bound1)
    bound2 = 1.0 / jnp.sqrt(d1)
    w2 = jax.random.uniform(kw2, (d1, k), jnp.float32, -bound2, bound2)
    b2 = jax.random.uniform(kb2, (k,), jnp.float32, -bound2, bound2)

    # At these shapes the budget-derived tb == B -> single grid step.
    out = feedforward(x, w1, b1, w2, b2)
    out = jax.block_until_ready(out)

    # Reference in plain f32 JAX (tolerance covers the bf16 MXU operands).
    h_ref = jax.nn.sigmoid(x @ w1 + b1)
    ref = jax.nn.softmax(h_ref @ w2 + b2, axis=-1)
    assert out.shape == (B, k)
    assert jnp.allclose(out, ref, atol=5e-3, rtol=5e-3)
    # Exact normalization (exact divide in-kernel).
    assert jnp.allclose(jnp.sum(out, axis=-1), 1.0, atol=1e-4)

    print("KERNEL_OK")
</pallas_src>

<mosaic_0001>
module attributes {stable_mosaic.version = 11 : i64} {
  func.func @feedforward_kernel(%arg0: i32, %arg1: memref<64x32xbf16, #tpu.memory_space<vmem>>, %arg2: memref<32x64xbf16, #tpu.memory_space<vmem>>, %arg3: memref<1x64xf32, #tpu.memory_space<vmem>>, %arg4: memref<64x128xbf16, #tpu.memory_space<vmem>>, %arg5: memref<1x128xf32, #tpu.memory_space<vmem>>, %arg6: memref<64x128xf32, #tpu.memory_space<vmem>>) attributes {dimension_semantics = [#tpu.dimension_semantics<parallel>], iteration_bounds = array<i64: 1>, scalar_prefetch = 0 : i64, scratch_operands = 0 : i64, tpu.core_type = #tpu.core_type<tc>, window_params = [{transform_indices = @transform_0, window_bounds = array<i64: 64, 32>}, {pipeline_mode = #tpu.pipeline_mode<synchronous>, transform_indices = @transform_1, window_bounds = array<i64: 32, 64>}, {pipeline_mode = #tpu.pipeline_mode<synchronous>, transform_indices = @transform_2, window_bounds = array<i64: 1, 64>}, {pipeline_mode = #tpu.pipeline_mode<synchronous>, transform_indices = @transform_3, window_bounds = array<i64: 64, 128>}, {pipeline_mode = #tpu.pipeline_mode<synchronous>, transform_indices = @transform_4, window_bounds = array<i64: 1, 128>}, {transform_indices = @transform_5, window_bounds = array<i64: 64, 128>}]} {
    %c0 = arith.constant 0 : index
    %c0_0 = arith.constant 0 : index
    %0 = vector.load %arg1[%c0, %c0_0] : memref<64x32xbf16, #tpu.memory_space<vmem>>, vector<64x32xbf16>
    %c0_1 = arith.constant 0 : index
    %c0_2 = arith.constant 0 : index
    %1 = vector.load %arg2[%c0_1, %c0_2] : memref<32x64xbf16, #tpu.memory_space<vmem>>, vector<32x64xbf16>
    %cst = arith.constant dense<0.000000e+00> : vector<64x64xf32>
    %2 = tpu.matmul %0, %1, %cst {dimension_numbers = #tpu.dot_dimension_numbers<[1], [0], [0], [1], [0, 0, 1, 1], [], []>} : vector<64x32xbf16>, vector<32x64xbf16>, vector<64x64xf32> -> vector<64x64xf32>
    %c0_3 = arith.constant 0 : index
    %c0_4 = arith.constant 0 : index
    %3 = vector.load %arg3[%c0_3, %c0_4] : memref<1x64xf32, #tpu.memory_space<vmem>>, vector<1x64xf32>
    %4 = vector.broadcast %3 : vector<1x64xf32> to vector<64x64xf32>
    %5 = arith.addf %2, %4 : vector<64x64xf32>
    %6 = arith.negf %5 : vector<64x64xf32>
    %7 = math.exp %6 : vector<64x64xf32>
    %cst_5 = arith.constant 1.000000e+00 : f32
    %8 = vector.broadcast %cst_5 : f32 to vector<64x64xf32>
    %9 = arith.addf %8, %7 : vector<64x64xf32>
    %10 = arith.divf %8, %9 : vector<64x64xf32>
    %11 = arith.truncf %10 : vector<64x64xf32> to vector<64x64xbf16>
    %c0_6 = arith.constant 0 : index
    %c0_7 = arith.constant 0 : index
    %12 = vector.load %arg4[%c0_6, %c0_7] : memref<64x128xbf16, #tpu.memory_space<vmem>>, vector<64x128xbf16>
    %cst_8 = arith.constant dense<0.000000e+00> : vector<64x128xf32>
    %13 = tpu.matmul %11, %12, %cst_8 {dimension_numbers = #tpu.dot_dimension_numbers<[1], [0], [0], [1], [0, 0, 1, 1], [], []>} : vector<64x64xbf16>, vector<64x128xbf16>, vector<64x128xf32> -> vector<64x128xf32>
    %c0_9 = arith.constant 0 : index
    %c0_10 = arith.constant 0 : index
    %14 = vector.load %arg5[%c0_9, %c0_10] : memref<1x128xf32, #tpu.memory_space<vmem>>, vector<1x128xf32>
    %15 = vector.broadcast %14 : vector<1x128xf32> to vector<64x128xf32>
    %16 = arith.addf %13, %15 : vector<64x128xf32>
    %cst_11 = arith.constant dense<0xFF800000> : vector<64xf32>
    %17 = vector.multi_reduction <maximumf>, %16, %cst_11 [1] : vector<64x128xf32> to vector<64xf32>
    %18 = vector.shape_cast %17 : vector<64xf32> to vector<64x1xf32>
    %19 = vector.broadcast %18 : vector<64x1xf32> to vector<64x128xf32>
    %20 = arith.subf %16, %19 : vector<64x128xf32>
    %21 = math.exp %20 : vector<64x128xf32>
    %cst_12 = arith.constant dense<0.000000e+00> : vector<64xf32>
    %22 = vector.multi_reduction <add>, %21, %cst_12 [1] : vector<64x128xf32> to vector<64xf32>
    %23 = vector.shape_cast %22 : vector<64xf32> to vector<64x1xf32>
    %24 = vector.broadcast %23 : vector<64x1xf32> to vector<64x128xf32>
    %25 = arith.divf %21, %24 : vector<64x128xf32>
    %c0_13 = arith.constant 0 : index
    %c0_14 = arith.constant 0 : index
    %26 = vector.load %arg6[%c0_13, %c0_14] : memref<64x128xf32, #tpu.memory_space<vmem>>, vector<64x128xf32>
    tpu.vector_store %arg6[%c0_13, %c0_14], %25 {strides = array<i32>} : memref<64x128xf32, #tpu.memory_space<vmem>>, vector<64x128xf32>,
    return
  }
  func.func @transform_0(%arg0: i32) -> (i32, i32) {
    %c0_i32 = arith.constant 0 : i32
    %c0_i32_0 = arith.constant 0 : i32
    return %arg0, %c0_i32 : i32, i32
  }
  func.func @transform_1(%arg0: i32) -> (i32, i32) {
    %c0_i32 = arith.constant 0 : i32
    %c0_i32_0 = arith.constant 0 : i32
    %c0_i32_1 = arith.constant 0 : i32
    return %c0_i32, %c0_i32_0 : i32, i32
  }
  func.func @transform_2(%arg0: i32) -> (i32, i32) {
    %c0_i32 = arith.constant 0 : i32
    %c0_i32_0 = arith.constant 0 : i32
    %c0_i32_1 = arith.constant 0 : i32
    return %c0_i32, %c0_i32_0 : i32, i32
  }
  func.func @transform_3(%arg0: i32) -> (i32, i32) {
    %c0_i32 = arith.constant 0 : i32
    %c0_i32_0 = arith.constant 0 : i32
    %c0_i32_1 = arith.constant 0 : i32
    return %c0_i32, %c0_i32_0 : i32, i32
  }
  func.func @transform_4(%arg0: i32) -> (i32, i32) {
    %c0_i32 = arith.constant 0 : i32
    %c0_i32_0 = arith.constant 0 : i32
    %c0_i32_1 = arith.constant 0 : i32
    return %c0_i32, %c0_i32_0 : i32, i32
  }
  func.func @transform_5(%arg0: i32) -> (i32, i32) {
    %c0_i32 = arith.constant 0 : i32
    %c0_i32_0 = arith.constant 0 : i32
    return %arg0, %c0_i32 : i32, i32
  }
}

</mosaic_0001>

<llo_original>
// kernel: tpu_custom_call.1
$region0: #{tpu_custom_call.1}
  #allocation0 [shape = 'u32[]', space=smem, size = 0x4, offset = 0x4, fixed_abs, tag = 'smem constant byte address 0x4 - core index']
  #allocation1 [shape = 'u32[144,128]{1,0:T(1,128)}', space=vmem, size = 0x12000, scoped, tag = 'internal scratch']
  %s0 = inlined_call_operand.hbm [shape: bf16[64,32], index: 0, kind: input, shape index: {}]
  %s1 = inlined_call_operand.hbm [shape: bf16[32,64], index: 1, kind: input, shape index: {}]
  %s2 = inlined_call_operand.hbm [shape: f32[1,64], index: 2, kind: input, shape index: {}]
  %s3 = inlined_call_operand.hbm [shape: bf16[64,128], index: 3, kind: input, shape index: {}]
  %s4 = inlined_call_operand.hbm [shape: f32[1,128], index: 4, kind: input, shape index: {}]
  %s5 = inlined_call_operand.hbm [shape: f32[64,128], index: 5, kind: output, shape index: {}]
  %s6 = sld [smem:[#allocation0]]
  $region50: #{tpu_custom_call.1} parent=0
    _
  %s8 = ssub.s32 1, %s6
  %s9 = scalar_select 0, %s8, %s6
  $region1: #{tpu_custom_call.1} parent=0
    #allocation2 [shape = 'u8[16384]{0}', space=vmem, size = 0x4000, scoped, tag = 'input window, operand 0, single buffered']
    #allocation3 [shape = 's32[1]{0}', space=sflag, size = 0x4, scoped, tag = 'scoped memory for tpu_custom_call.1']
    #allocation4 [shape = 's32[1]{0}', space=sflag, size = 0x4, scoped, tag = 'scoped memory for tpu_custom_call.1']
    #allocation5 [shape = 'u8[8192]{0}', space=vmem, size = 0x2000, scoped, tag = 'input window, operand 1, single buffered']
    #allocation6 [shape = 's32[1]{0}', space=sflag, size = 0x4, scoped, tag = 'scoped memory for tpu_custom_call.1']
    #allocation7 [shape = 'u8[512]{0}', space=vmem, size = 0x400, scoped, tag = 'input window, operand 2, single buffered']
    #allocation8 [shape = 'u8[16384]{0}', space=vmem, size = 0x4000, scoped, tag = 'input window, operand 3, single buffered']
    #allocation9 [shape = 's32[1]{0}', space=sflag, size = 0x4, scoped, tag = 'scoped memory for tpu_custom_call.1']
    #allocation10 [shape = 'u8[512]{0}', space=vmem, size = 0x400, scoped, tag = 'input window, operand 4, single buffered']
    #allocation11 [shape = 'u8[32768]{0}', space=vmem, size = 0x8000, scoped, tag = 'output window, operand 0, single buffered']
    %10 = vsyncpa [#allocation3], 0
    %11 = vsyncpa [#allocation6], 0
    %12 = vsyncpa [#allocation9], 0
    %13 = vsyncpa [#allocation4], 0
    // Predicated region
    $region2: #{tpu_custom_call.1} parent=1 // pred_check
      _
    $region3: #{tpu_custom_call.1} parent=1 // pred_check_branch
      %15 = sbr.rel (0) target = $region5
    $region4: #{tpu_custom_call.1} parent=1 // pred_region
      %s17 = ssub.s32 512, 512
      %18 = vsyncadd [#allocation3], %s17
      %s19 = sshll.u32 [#allocation2], 4
      %s20 = int_to_ptr.vmem [resolvable:$true] %s19
      %25 = dma.hbm_to_vmem [thread:$0]  %s0, 512, %s20, [#allocation3], 64, 64, 4
    $region5: #{tpu_custom_call.1} parent=1 // pred_fallthru
      _
    // Predicated region
    $region6: #{tpu_custom_call.1} parent=1 // pred_check
      _
    $region7: #{tpu_custom_call.1} parent=1 // pred_check_branch
      %27 = sbr.rel (0) target = $region9
    $region8: #{tpu_custom_call.1} parent=1 // pred_region
      %s29 = ssub.s32 256, 256
      %30 = vsyncadd [#allocation6], %s29
      %s31 = sshll.u32 [#allocation5], 4
      %s32 = int_to_ptr.vmem [resolvable:$true] %s31
      %37 = dma.hbm_to_vmem [thread:$0]  %s1, 256, %s32, [#allocation6], 64, 64, 4
    $region9: #{tpu_custom_call.1} parent=1 // pred_fallthru
      _
    // Predicated region
    $region10: #{tpu_custom_call.1} parent=1 // pred_check
      _
    $region11: #{tpu_custom_call.1} parent=1 // pred_check_branch
      %39 = sbr.rel (0) target = $region13
    $region12: #{tpu_custom_call.1} parent=1 // pred_region
      %s41 = ssub.s32 16, 16
      %42 = vsyncadd [#allocation6], %s41
      %s44 = sshll.u32 [#allocation7], 4
      %s45 = int_to_ptr.vmem [resolvable:$true] %s44
      %47 = dma.hbm_to_vmem [thread:$0]  %s2, 16, %s45, [#allocation6]
    $region13: #{tpu_custom_call.1} parent=1 // pred_fallthru
      _
    // Predicated region
    $region14: #{tpu_custom_call.1} parent=1 // pred_check
      _
    $region15: #{tpu_custom_call.1} parent=1 // pred_check_branch
      %49 = sbr.rel (0) target = $region17
    $region16: #{tpu_custom_call.1} parent=1 // pred_region
      %s51 = ssub.s32 512, 512
      %52 = vsyncadd [#allocation9], %s51
      %s53 = sshll.u32 [#allocation8], 4
      %s54 = int_to_ptr.vmem [resolvable:$true] %s53
      %59 = dma.hbm_to_vmem [thread:$0]  %s3, 512, %s54, [#allocation9], 64, 64, 4
    $region17: #{tpu_custom_call.1} parent=1 // pred_fallthru
      _
    // Predicated region
    $region18: #{tpu_custom_call.1} parent=1 // pred_check
      _
    $region19: #{tpu_custom_call.1} parent=1 // pred_check_branch
      %61 = sbr.rel (0) target = $region21
    $region20: #{tpu_custom_call.1} parent=1 // pred_region
      %s63 = ssub.s32 16, 16
      %64 = vsyncadd [#allocation9], %s63
      %s66 = sshll.u32 [#allocation10], 4
      %s67 = int_to_ptr.vmem [resolvable:$true] %s66
      %69 = dma.hbm_to_vmem [thread:$0]  %s4, 16, %s67, [#allocation9]
    $region21: #{tpu_custom_call.1} parent=1 // pred_fallthru
      _
    // Predicated region
    $region22: #{tpu_custom_call.1} parent=1 // pred_check
      _
    $region23: #{tpu_custom_call.1} parent=1 // pred_check_branch
      %71 = sbr.rel (0) target = $region25
    $region24: #{tpu_custom_call.1} parent=1 // pred_region
      %72 = dma.done [#allocation3], 512
    $region25: #{tpu_custom_call.1} parent=1 // pred_fallthru
      _
    // Predicated region
    $region26: #{tpu_custom_call.1} parent=1 // pred_check
      _
    $region27: #{tpu_custom_call.1} parent=1 // pred_check_branch
      %74 = sbr.rel (0) target = $region29
    $region28: #{tpu_custom_call.1} parent=1 // pred_region
      %75 = dma.done [#allocation6], 256
    $region29: #{tpu_custom_call.1} parent=1 // pred_fallthru
      _
    // Predicated region
    $region30: #{tpu_custom_call.1} parent=1 // pred_check
      _
    $region31: #{tpu_custom_call.1} parent=1 // pred_check_branch
      %77 = sbr.rel (0) target = $region33
    $region32: #{tpu_custom_call.1} parent=1 // pred_region
      %78 = dma.done [#allocation6], 16
    $region33: #{tpu_custom_call.1} parent=1 // pred_fallthru
      _
    // Predicated region
    $region34: #{tpu_custom_call.1} parent=1 // pred_check
      _
    $region35: #{tpu_custom_call.1} parent=1 // pred_check_branch
      %80 = sbr.rel (0) target = $region37
    $region36: #{tpu_custom_call.1} parent=1 // pred_region
      %81 = dma.done [#allocation9], 512
    $region37: #{tpu_custom_call.1} parent=1 // pred_fallthru
      _
    // Predicated region
    $region38: #{tpu_custom_call.1} parent=1 // pred_check
      _
    $region39: #{tpu_custom_call.1} parent=1 // pred_check_branch
      %83 = sbr.rel (0) target = $region41
    $region40: #{tpu_custom_call.1} parent=1 // pred_region
      %84 = dma.done [#allocation9], 16
    $region41: #{tpu_custom_call.1} parent=1 // pred_fallthru
      _
    %v86 = vld [vmem:[#allocation2] sm:$0xf]
    %v87 = vld [vmem:[#allocation2 + $0x4] sm:$0xf]
    %v88 = vld [vmem:[#allocation2 + $0x8] sm:$0xf]
    %v89 = vld [vmem:[#allocation2 + $0xc] sm:$0xf]
    %v90 = vld [vmem:[#allocation2 + $0x10] sm:$0xf]
    %v91 = vld [vmem:[#allocation2 + $0x14] sm:$0xf]
    %v92 = vld [vmem:[#allocation2 + $0x18] sm:$0xf]
    %v93 = vld [vmem:[#allocation2 + $0x1c] sm:$0xf]
    %v94 = vld [vmem:[#allocation5] sm:$0xf]
    %v95 = vld [vmem:[#allocation5 + $0x4] sm:$0xf]
    %v96 = vld [vmem:[#allocation5 + $0x8] sm:$0xf]
    %v97 = vld [vmem:[#allocation5 + $0xc] sm:$0xf]
    %v98 = vld [vmem:[#allocation7] sm:$0x1]
    %v100 = vlaneseq
    %v101 = vshrl.u32 %v100, 7
    %v102 = vsub.s32 0, %v101
    %v103 = vrot.slane %v98, %v102
    %v113 = vunpack.c.l.b16 %v86
    %v114 = vunpack.c.l.b16 %v87
    %v115 = vunpack.c.l.b16 %v88
    %v116 = vunpack.c.l.b16 %v89
    %v117 = vunpack.c.l.b16 %v90
    %v118 = vunpack.c.l.b16 %v91
    %v119 = vunpack.c.l.b16 %v92
    %v120 = vunpack.c.l.b16 %v93
    %v121 = vpack.c.b16 %v114, %v113
    %v122 = vpack.c.b16 %v116, %v115
    %v123 = vpack.c.b16 %v118, %v117
    %v124 = vpack.c.b16 %v120, %v119
    %v129 = vunpack.c.l.b16 %v94
    %v130 = vunpack.c.l.b16 %v95
    %v131 = vunpack.c.l.b16 %v96
    %v132 = vunpack.c.l.b16 %v97
    %v133 = vpack.c.b16 %v130, %v129
    %v134 = vpack.c.b16 %v132, %v131
    %vm137 = vcmask 261120
    %v139 = vsel %vm137, %v121, 0
    %v142 = vsel %vm137, %v122, 0
    %v145 = vsel %vm137, %v123, 0
    %v148 = vsel %vm137, %v124, 0
    %150 = vmatprep.subr.bf16.mxu0 0
    %151 = vmatpush1.bf16.msra.mxu0 %v133
    %152 = vmatprep.subr.bf16.mxu0 0
    %153 = vmatpush1.bf16.msra.mxu0 %v134
    %154 = vmatprep.subr.bf16.mxu0 0
    %155 = vmatpush1.bf16.msra.mxu0 0
    %156 = vmatprep.subr.bf16.mxu0 0
    %157 = vmatpush1.bf16.msra.mxu0 0
    %158 = vmatprep.subr.bf16.mxu0 0
    %159 = vmatpush1.bf16.msra.mxu0 0
    %160 = vmatprep.subr.bf16.mxu0 0
    %161 = vmatpush1.bf16.msra.mxu0 0
    %162 = vmatprep.subr.bf16.mxu0 0
    %163 = vmatpush1.bf16.msra.mxu0 0
    %164 = vmatprep.subr.bf16.mxu0 0
    %165 = vmatpush1.bf16.msra.mxu0 0
    %166 = vmatprep.subr.bf16.mxu0 0
    %167 = vmatpush1.bf16.msra.mxu0 0
    %168 = vmatprep.subr.bf16.mxu0 0
    %169 = vmatpush1.bf16.msra.mxu0 0
    %170 = vmatprep.subr.bf16.mxu0 0
    %171 = vmatpush1.bf16.msra.mxu0 0
    %172 = vmatprep.subr.bf16.mxu0 0
    %173 = vmatpush1.bf16.msra.mxu0 0
    %174 = vmatprep.subr.bf16.mxu0 0
    %175 = vmatpush1.bf16.msra.mxu0 0
    %176 = vmatprep.subr.bf16.mxu0 0
    %177 = vmatpush1.bf16.msra.mxu0 0
    %178 = vmatprep.subr.bf16.mxu0 0
    %179 = vmatpush1.bf16.msra.mxu0 0
    %180 = vmatprep.subr.bf16.mxu0 0
    %181 = vmatpush1.bf16.msra.mxu0 0
    %182 = vmatprep.mubr.bf16.mxu0 0
    %183 = vmatmul.mubr.bf16.gmra.mrb[0].mxu0 %v139
    %v184 = vpop.f32.mrb[0].mxu0
    %v185 = vadd.f32 %v103, %v184
    %v186 = vpop.f32.mrb[0].mxu0
    %v187 = vpop.f32.mrb[0].mxu0
    %v188 = vadd.f32 %v103, %v187
    %v189 = vpop.f32.mrb[0].mxu0
    %190 = vmatprep.mubr.bf16.mxu0 0
    %191 = vmatmul.mubr.bf16.gmra.mrb[0].mxu0 %v142
    %v192 = vpop.f32.mrb[0].mxu0
    %v193 = vadd.f32 %v103, %v192
    %v194 = vpop.f32.mrb[0].mxu0
    %v195 = vpop.f32.mrb[0].mxu0
    %v196 = vadd.f32 %v103, %v195
    %v197 = vpop.f32.mrb[0].mxu0
    %198 = vmatprep.mubr.bf16.mxu0 0
    %199 = vmatmul.mubr.bf16.gmra.mrb[0].mxu0 %v145
    %v200 = vpop.f32.mrb[0].mxu0
    %v201 = vadd.f32 %v103, %v200
    %v202 = vpop.f32.mrb[0].mxu0
    %v203 = vpop.f32.mrb[0].mxu0
    %v204 = vadd.f32 %v103, %v203
    %v205 = vpop.f32.mrb[0].mxu0
    %206 = vmatprep.mubr.bf16.mxu0 0
    %207 = vmatmul.mubr.bf16.gmra.mrb[0].mxu0 %v148
    %v208 = vpop.f32.mrb[0].mxu0
    %v209 = vadd.f32 %v103, %v208
    %v210 = vpop.f32.mrb[0].mxu0
    %v211 = vpop.f32.mrb[0].mxu0
    %v212 = vadd.f32 %v103, %v211
    %v213 = vpop.f32.mrb[0].mxu0
    %214 = vdwg.mxu0
    %v215 = vxor.u32 %v185, 2147483648
    %v216 = vxor.u32 %v188, 2147483648
    %v217 = vxor.u32 %v193, 2147483648
    %v218 = vxor.u32 %v196, 2147483648
    %v219 = vxor.u32 %v201, 2147483648
    %v220 = vxor.u32 %v204, 2147483648
    %v221 = vxor.u32 %v209, 2147483648
    %v222 = vxor.u32 %v212, 2147483648
    %v223 = vmul.f32 %v215, 1.442695
    %v224 = vpow.pop %v223
    %v225 = vmul.f32 %v216, 1.442695
    %v226 = vpow.pop %v225
    %v227 = vmul.f32 %v217, 1.442695
    %v228 = vpow.pop %v227
    %v229 = vmul.f32 %v218, 1.442695
    %v230 = vpow.pop %v229
    %v231 = vmul.f32 %v219, 1.442695
    %v232 = vpow.pop %v231
    %v233 = vmul.f32 %v220, 1.442695
    %v234 = vpow.pop %v233
    %v235 = vmul.f32 %v221, 1.442695
    %v236 = vpow.pop %v235
    %v237 = vmul.f32 %v222, 1.442695
    %v238 = vpow.pop %v237
    %v239 = vadd.f32 %v224, 1.0
    %v240 = vadd.f32 %v226, 1.0
    %v241 = vadd.f32 %v228, 1.0
    %v242 = vadd.f32 %v230, 1.0
    %v243 = vadd.f32 %v232, 1.0
    %v244 = vadd.f32 %v234, 1.0
    %v245 = vadd.f32 %v236, 1.0
    %v246 = vadd.f32 %v238, 1.0
    %v247 = vrcp.pop %v239
    %v248 = vmul.f32 1.0, %v247
    %v249 = vrcp.pop %v240
    %v250 = vmul.f32 1.0, %v249
    %v251 = vrcp.pop %v241
    %v252 = vmul.f32 1.0, %v251
    %v253 = vrcp.pop %v242
    %v254 = vmul.f32 1.0, %v253
    %v255 = vrcp.pop %v243
    %v256 = vmul.f32 1.0, %v255
    %v257 = vrcp.pop %v244
    %v258 = vmul.f32 1.0, %v257
    %v259 = vrcp.pop %v245
    %v260 = vmul.f32 1.0, %v259
    %v261 = vrcp.pop %v246
    %v262 = vmul.f32 1.0, %v261
    %v263 = vpack.c.bf16 %v250, %v248
    %v264 = vpack.c.bf16 %v254, %v252
    %v265 = vpack.c.bf16 %v258, %v256
    %v266 = vpack.c.bf16 %v262, %v260
    %v267 = vld [vmem:[#allocation8] sm:$0xf]
    %v268 = vld [vmem:[#allocation8 + $0x4] sm:$0xf]
    %v269 = vld [vmem:[#allocation8 + $0x8] sm:$0xf]
    %v270 = vld [vmem:[#allocation8 + $0xc] sm:$0xf]
    %v271 = vld [vmem:[#allocation8 + $0x10] sm:$0xf]
    %v272 = vld [vmem:[#allocation8 + $0x14] sm:$0xf]
    %v273 = vld [vmem:[#allocation8 + $0x18] sm:$0xf]
    %v274 = vld [vmem:[#allocation8 + $0x1c] sm:$0xf]
    %v275 = vld [vmem:[#allocation10] sm:$0x1]
    %v277 = vlaneseq
    %v278 = vshrl.u32 %v277, 7
    %v279 = vsub.s32 0, %v278
    %v280 = vrot.slane %v275, %v279
    %v290 = vunpack.c.l.b16 %v267
    %v291 = vunpack.c.l.b16 %v268
    %v292 = vunpack.c.l.b16 %v269
    %v293 = vunpack.c.l.b16 %v270
    %v294 = vunpack.c.l.b16 %v271
    %v295 = vunpack.c.l.b16 %v272
    %v296 = vunpack.c.l.b16 %v273
    %v297 = vunpack.c.l.b16 %v274
    %v298 = vpack.c.b16 %v291, %v290
    %v299 = vpack.c.b16 %v293, %v292
    %v300 = vpack.c.b16 %v295, %v294
    %v301 = vpack.c.b16 %v297, %v296
    %vm306 = vcmask 523264
    %v308 = vsel %vm306, %v263, 0
    %v311 = vsel %vm306, %v264, 0
    %v314 = vsel %vm306, %v265, 0
    %v317 = vsel %vm306, %v266, 0
    %319 = vmatprep.subr.bf16.mxu0 0
    %320 = vmatpush1.bf16.msra.mxu0 %v298
    %321 = vmatprep.subr.bf16.mxu0 0
    %322 = vmatpush1.bf16.msra.mxu0 %v299
    %323 = vmatprep.subr.bf16.mxu0 0
    %324 = vmatpush1.bf16.msra.mxu0 %v300
    %325 = vmatprep.subr.bf16.mxu0 0
    %326 = vmatpush1.bf16.msra.mxu0 %v301
    %327 = vmatprep.subr.bf16.mxu0 0
    %328 = vmatpush1.bf16.msra.mxu0 0
    %329 = vmatprep.subr.bf16.mxu0 0
    %330 = vmatpush1.bf16.msra.mxu0 0
    %331 = vmatprep.subr.bf16.mxu0 0
    %332 = vmatpush1.bf16.msra.mxu0 0
    %333 = vmatprep.subr.bf16.mxu0 0
    %334 = vmatpush1.bf16.msra.mxu0 0
    %335 = vmatprep.subr.bf16.mxu0 0
    %336 = vmatpush1.bf16.msra.mxu0 0
    %337 = vmatprep.subr.bf16.mxu0 0
    %338 = vmatpush1.bf16.msra.mxu0 0
    %339 = vmatprep.subr.bf16.mxu0 0
    %340 = vmatpush1.bf16.msra.mxu0 0
    %341 = vmatprep.subr.bf16.mxu0 0
    %342 = vmatpush1.bf16.msra.mxu0 0
    %343 = vmatprep.subr.bf16.mxu0 0
    %344 = vmatpush1.bf16.msra.mxu0 0
    %345 = vmatprep.subr.bf16.mxu0 0
    %346 = vmatpush1.bf16.msra.mxu0 0
    %347 = vmatprep.subr.bf16.mxu0 0
    %348 = vmatpush1.bf16.msra.mxu0 0
    %349 = vmatprep.subr.bf16.mxu0 0
    %350 = vmatpush1.bf16.msra.mxu0 0
    %351 = vmatprep.mubr.bf16.mxu0 0
    %352 = vmatmul.mubr.bf16.gmra.mrb[0].mxu0 %v308
    %v353 = vpop.f32.mrb[0].mxu0
    %v354 = vadd.f32 %v280, %v353
    %v355 = vpop.f32.mrb[0].mxu0
    %v356 = vpop.f32.mrb[0].mxu0
    %v357 = vadd.f32 %v280, %v356
    %v358 = vpop.f32.mrb[0].mxu0
    %359 = vmatprep.mubr.bf16.mxu0 0
    %360 = vmatmul.mubr.bf16.gmra.mrb[0].mxu0 %v311
    %v361 = vpop.f32.mrb[0].mxu0
    %v362 = vadd.f32 %v280, %v361
    %v363 = vpop.f32.mrb[0].mxu0
    %v364 = vpop.f32.mrb[0].mxu0
    %v365 = vadd.f32 %v280, %v364
    %v366 = vpop.f32.mrb[0].mxu0
    %367 = vmatprep.mubr.bf16.mxu0 0
    %368 = vmatmul.mubr.bf16.gmra.mrb[0].mxu0 %v314
    %v369 = vpop.f32.mrb[0].mxu0
    %v370 = vadd.f32 %v280, %v369
    %v371 = vpop.f32.mrb[0].mxu0
    %v372 = vpop.f32.mrb[0].mxu0
    %v373 = vadd.f32 %v280, %v372
    %v374 = vpop.f32.mrb[0].mxu0
    %375 = vmatprep.mubr.bf16.mxu0 0
    %376 = vmatmul.mubr.bf16.gmra.mrb[0].mxu0 %v317
    %v377 = vpop.f32.mrb[0].mxu0
    %v378 = vadd.f32 %v280, %v377
    %v379 = vpop.f32.mrb[0].mxu0
    %v380 = vpop.f32.mrb[0].mxu0
    %v381 = vadd.f32 %v280, %v380
    %v382 = vpop.f32.mrb[0].mxu0
    %383 = vdwg.mxu0
    %384 = vmax.xlane.f32.xlu0 %v354
    %v385 = vpop.xlane.xlu0 %384
    %386 = vmax.xlane.f32.xlu0 %v357
    %v387 = vpop.xlane.xlu0 %386
    %388 = vmax.xlane.f32.xlu0 %v362
    %v389 = vpop.xlane.xlu0 %388
    %390 = vmax.xlane.f32.xlu0 %v365
    %v391 = vpop.xlane.xlu0 %390
    %392 = vmax.xlane.f32.xlu0 %v370
    %v393 = vpop.xlane.xlu0 %392
    %394 = vmax.xlane.f32.xlu0 %v373
    %v395 = vpop.xlane.xlu0 %394
    %396 = vmax.xlane.f32.xlu0 %v378
    %v397 = vpop.xlane.xlu0 %396
    %398 = vmax.xlane.f32.xlu0 %v381
    %v399 = vpop.xlane.xlu0 %398
    %v400 = vsub.f32 %v354, %v385
    %v401 = vsub.f32 %v357, %v387
    %v402 = vsub.f32 %v362, %v389
    %v403 = vsub.f32 %v365, %v391
    %v404 = vsub.f32 %v370, %v393
    %v405 = vsub.f32 %v373, %v395
    %v406 = vsub.f32 %v378, %v397
    %v407 = vsub.f32 %v381, %v399
    %v408 = vmul.f32 %v400, 1.442695
    %v409 = vpow.pop %v408
    %v410 = vmul.f32 %v401, 1.442695
    %v411 = vpow.pop %v410
    %v412 = vmul.f32 %v402, 1.442695
    %v413 = vpow.pop %v412
    %v414 = vmul.f32 %v403, 1.442695
    %v415 = vpow.pop %v414
    %v416 = vmul.f32 %v404, 1.442695
    %v417 = vpow.pop %v416
    %v418 = vmul.f32 %v405, 1.442695
    %v419 = vpow.pop %v418
    %v420 = vmul.f32 %v406, 1.442695
    %v421 = vpow.pop %v420
    %v422 = vmul.f32 %v407, 1.442695
    %v423 = vpow.pop %v422
    %424 = vadd.xlane.f32.xlu0 %v409
    %v425 = vpop.xlane.xlu0 %424
    %426 = vadd.xlane.f32.xlu0 %v411
    %v427 = vpop.xlane.xlu0 %426
    %428 = vadd.xlane.f32.xlu0 %v413
    %v429 = vpop.xlane.xlu0 %428
    %430 = vadd.xlane.f32.xlu0 %v415
    %v431 = vpop.xlane.xlu0 %430
    %432 = vadd.xlane.f32.xlu0 %v417
    %v433 = vpop.xlane.xlu0 %432
    %434 = vadd.xlane.f32.xlu0 %v419
    %v435 = vpop.xlane.xlu0 %434
    %436 = vadd.xlane.f32.xlu0 %v421
    %v437 = vpop.xlane.xlu0 %436
    %438 = vadd.xlane.f32.xlu0 %v423
    %v439 = vpop.xlane.xlu0 %438
    %v440 = vrcp.pop %v425
    %v441 = vmul.f32 %v409, %v440
    %v442 = vrcp.pop %v427
    %v443 = vmul.f32 %v411, %v442
    %v444 = vrcp.pop %v429
    %v445 = vmul.f32 %v413, %v444
    %v446 = vrcp.pop %v431
    %v447 = vmul.f32 %v415, %v446
    %v448 = vrcp.pop %v433
    %v449 = vmul.f32 %v417, %v448
    %v450 = vrcp.pop %v435
    %v451 = vmul.f32 %v419, %v450
    %v452 = vrcp.pop %v437
    %v453 = vmul.f32 %v421, %v452
    %v454 = vrcp.pop %v439
    %v455 = vmul.f32 %v423, %v454
    %456 = vst [vmem:[#allocation11] sm:$0xff] %v441
    %457 = vst [vmem:[#allocation11 + $0x8] sm:$0xff] %v443
    %458 = vst [vmem:[#allocation11 + $0x10] sm:$0xff] %v445
    %459 = vst [vmem:[#allocation11 + $0x18] sm:$0xff] %v447
    %460 = vst [vmem:[#allocation11 + $0x20] sm:$0xff] %v449
    %461 = vst [vmem:[#allocation11 + $0x28] sm:$0xff] %v451
    %462 = vst [vmem:[#allocation11 + $0x30] sm:$0xff] %v453
    %463 = vst [vmem:[#allocation11 + $0x38] sm:$0xff] %v455
    // Predicated region
    $region42: #{tpu_custom_call.1} parent=1 // pred_check
      _
    $region43: #{tpu_custom_call.1} parent=1 // pred_check_branch
      %465 = sbr.rel (0) target = $region45
    $region44: #{tpu_custom_call.1} parent=1 // pred_region
      %s467 = ssub.s32 1024, 1024
      %468 = vsyncadd [#allocation4], %s467
      %s469 = sshll.u32 [#allocation11], 4
      %s470 = int_to_ptr.vmem [resolvable:$true] %s469
      %475 = dma.vmem_to_hbm [thread:$0]  %s470, 1024, %s5, [#allocation4], 128, 128, 8
    $region45: #{tpu_custom_call.1} parent=1 // pred_fallthru
      _
    // Predicated region
    $region46: #{tpu_custom_call.1} parent=1 // pred_check
      _
    $region47: #{tpu_custom_call.1} parent=1 // pred_check_branch
      %477 = sbr.rel (0) target = $region49
    $region48: #{tpu_custom_call.1} parent=1 // pred_region
      %478 = dma.done [#allocation4], 1024
    $region49: #{tpu_custom_call.1} parent=1 // pred_fallthru
      _
    %479 = vsyncpa [#allocation3], 1
    %480 = vsyncpa [#allocation6], 1
    %481 = vsyncpa [#allocation9], 1
    %482 = vsyncpa [#allocation4], 1

</llo_original>
